<compile_context>
chip_gen: v6e
topology: v6e:2x2x1
jax: 0.10.0
libtpu: 0.0.40
codegen_flags: <defaults>
</compile_context>

<pallas_src>
import functools

import jax
import jax.numpy as jnp
from jax.experimental import pallas as pl
from jax.experimental.pallas import tpu as pltpu


# --------------------------------------------------------------------------- #
# Tiling helpers
# --------------------------------------------------------------------------- #

def _largest_divisor(n, limit, multiple_of=1):
    """Largest d with d | n, d <= limit, d % multiple_of == 0 (or None)."""
    best = None
    for d in range(1, min(n, limit) + 1):
        if n % d == 0 and d % multiple_of == 0:
            best = d
    return best


def _vmem_limit_bytes():
    """Generation-aware scoped-VMEM limit (v7x: 64 MiB phys -> 32 MiB here)."""
    default = 32 * 1024 * 1024
    try:
        info = pltpu.get_tpu_info()
        phys = int(getattr(info, "vmem_capacity_bytes", 0) or 0)
        if phys > 0:
            return max(default, min(phys // 2, 64 * 1024 * 1024))
    except Exception:
        pass
    return default


def _pick_fused_tc(C, per_c_vmem, per_c_dma, vmem_budget, dma_target):
    """Channel-tile for the fused single-pass kernel (None if nothing fits).

    Prefers the smallest legal tc whose per-step DMA reaches `dma_target`
    (amortizes ~0.35 us/step and keeps C//tc >= 2 for v7x megacore when
    possible); otherwise the largest tc that fits the VMEM budget.
    """
    cands = [d for d in range(1, C + 1)
             if C % d == 0 and (d % 8 == 0 or d == C)]
    feas = [d for d in sorted(cands) if d * per_c_vmem <= vmem_budget]
    if not feas:
        return None
    for d in feas:
        if d * per_c_dma >= dma_target:
            return d
    return feas[-1]


def _pick_fallback_tiles(B, C, N, itemsize, budget_bytes):
    """Tiles for the two-pass fallback. Returns (tb, tc, tn, Np), Np >= N."""
    block_budget = max(128 * 1024, budget_bytes // 8)   # 4-8 MiB blocks typically
    tc = 8 if (C >= 8 and C % 8 == 0) else C            # (8,128) rule / full C
    elem = max(itemsize, 4)                             # also bounds f32 scratch
    max_tn = max(128, block_budget // (tc * elem))
    Np = N
    if N % 128 == 0:
        tn = _largest_divisor(N, min(N, max_tn), 128) or N
    elif tc * N * elem <= block_budget:
        tn = N                                          # full-extent lane block is legal
    else:
        Np = ((N + 127) // 128) * 128                   # zero-pad (stats unaffected)
        tn = _largest_divisor(Np, min(Np, max_tn), 128) or 128
    per_b = tc * tn * itemsize
    tb = _largest_divisor(B, max(1, block_budget // per_b)) or 1
    return tb, tc, tn, Np


# --------------------------------------------------------------------------- #
# Kernels
# --------------------------------------------------------------------------- #

def _bn_fused_kernel(x_ref, gamma_ref, beta_ref, o_ref, *, inv_n, eps, affine):
    """Single-pass BN for a channel-resident slab.

    x_ref/o_ref: (B, tc, N) resident in VMEM; gamma/beta: (tc, 1).
    Centered (two-pass-in-VMEM) variance, matching the PyTorch reference.
    """
    inv_nf = jnp.float32(inv_n)
    x = x_ref[...].astype(jnp.float32)                              # (B, tc, N)
    mean = jnp.sum(jnp.sum(x, axis=0), axis=1, keepdims=True) * inv_nf   # (tc, 1)
    d = x - mean                                                    # broadcast
    var = jnp.sum(jnp.sum(d * d, axis=0), axis=1, keepdims=True) * inv_nf
    inv_std = jax.lax.rsqrt(var + jnp.float32(eps))                 # EUP slot
    if affine:  # static flag -> dead code removed when affine=False
        scale = gamma_ref[...].astype(jnp.float32) * inv_std        # (tc, 1)
        y = d * scale + beta_ref[...].astype(jnp.float32)
    else:
        y = d * inv_std
    o_ref[...] = y.astype(o_ref.dtype)


def _bn_stats_kernel(x_ref, gamma_ref, beta_ref, scale_ref, shift_ref,
                     sum_ref, sq_ref, *, inv_n, eps, affine):
    """Fallback pass 1: per-channel scale/shift.

    x_ref: (tb, tc, tn); sum/sq scratch: (tc, tn) f32 (VPU-only per-step adds);
    gamma/beta/scale/shift: (tc, 1). Lane reduce happens only in finalize.
    """
    b = pl.program_id(1)
    n = pl.program_id(2)

    @pl.when(jnp.logical_and(b == 0, n == 0))
    def _init():
        sum_ref[...] = jnp.zeros_like(sum_ref)
        sq_ref[...] = jnp.zeros_like(sq_ref)

    x = x_ref[...].astype(jnp.float32)                   # (tb, tc, tn)
    sum_ref[...] += jnp.sum(x, axis=0)                   # (tc, tn) VPU adds
    sq_ref[...] += jnp.sum(x * x, axis=0)                # (tc, tn) VPU adds

    @pl.when(jnp.logical_and(b == pl.num_programs(1) - 1,
                             n == pl.num_programs(2) - 1))
    def _finalize():
        s = jnp.sum(sum_ref[...], axis=1, keepdims=True)     # one XLU reduce
        q = jnp.sum(sq_ref[...], axis=1, keepdims=True)
        mean = s * jnp.float32(inv_n)
        # TODO(synk): E[x^2]-mean^2 can cancel for large DC offsets; the fused
        # (primary) path uses the centered form and avoids this.
        var = jnp.maximum(q * jnp.float32(inv_n) - mean * mean, 0.0)
        inv_std = jax.lax.rsqrt(var + jnp.float32(eps))
        if affine:
            scale = gamma_ref[...].astype(jnp.float32) * inv_std
            shift = beta_ref[...].astype(jnp.float32) - mean * scale
        else:
            scale = inv_std
            shift = -(mean * inv_std)
        scale_ref[...] = scale
        shift_ref[...] = shift


def _bn_norm_kernel(x_ref, scale_ref, shift_ref, o_ref):
    """Fallback pass 2: y = x * scale[c] + shift[c] (one FMA per element)."""
    o_ref[...] = (x_ref[...] * scale_ref[...] + shift_ref[...]).astype(o_ref.dtype)


# --------------------------------------------------------------------------- #
# Wrapper
# --------------------------------------------------------------------------- #

def custom_batchnorm2d(x, gamma=None, beta=None, *, eps=1e-5, affine=True,
                       _force_two_pass=False):
    """Per-channel batch norm with biased variance (matches CustomBatchNorm2d).

    x: (B, C, H, W); gamma/beta: (C,) used only when affine=True.
    """
    B, C, H, W = x.shape
    N = H * W
    n_elems = B * N
    itemsize = x.dtype.itemsize

    # Free reshape (contiguous merge of trailing dims): NCHW -> (B, C, H*W).
    x3 = x.reshape(B, C, N)

    if affine:
        if gamma is None:
            gamma = jnp.ones((C,), dtype=jnp.float32)
        if beta is None:
            beta = jnp.zeros((C,), dtype=jnp.float32)
        gamma2d = gamma.reshape(C, 1).astype(jnp.float32)
        beta2d = beta.reshape(C, 1).astype(jnp.float32)
    else:
        # Unused by the kernels (static `affine` flag skips the affine math).
        gamma2d = jnp.zeros((C, 1), dtype=jnp.float32)
        beta2d = jnp.zeros((C, 1), dtype=jnp.float32)

    vmem_limit = _vmem_limit_bytes()
    budget = int(0.9 * vmem_limit)
    inv_n = 1.0 / float(n_elems)

    # ---------------- Fused single-pass (channel-resident) path -------------
    # Live VMEM per channel ~= 2x in + 2x out pipeline buffers (input dtype)
    # plus ~4 f32 temporaries of the slab.
    per_c_vmem = B * N * (4 * itemsize + 16)
    per_c_dma = B * N * itemsize
    tc_fused = None if _force_two_pass else _pick_fused_tc(
        C, per_c_vmem, per_c_dma, budget, 2 * 1024 * 1024)

    if tc_fused is not None:
        grid = (C // tc_fused,)
        x_spec = pl.BlockSpec((B, tc_fused, N), lambda c: (0, c, 0))
        ch_spec = pl.BlockSpec((tc_fused, 1), lambda c: (c, 0))
        cost = pl.CostEstimate(flops=int(7 * B * C * N),
                               transcendentals=int(C),
                               bytes_accessed=int(2 * B * C * N * itemsize))
        out3 = pl.pallas_call(
            functools.partial(_bn_fused_kernel, inv_n=inv_n, eps=float(eps),
                              affine=bool(affine)),
            out_shape=jax.ShapeDtypeStruct((B, C, N), x.dtype),
            grid_spec=pltpu.PrefetchScalarGridSpec(
                num_scalar_prefetch=0,
                grid=grid,
                in_specs=[x_spec, ch_spec, ch_spec],
                out_specs=x_spec,
            ),
            compiler_params=pltpu.CompilerParams(
                dimension_semantics=("parallel",),
                vmem_limit_bytes=vmem_limit),
            cost_estimate=cost,
        )(x3, gamma2d, beta2d)
        return out3.reshape(B, C, H, W)

    # ---------------- Two-pass fallback (slab doesn't fit VMEM) -------------
    tb, tc, tn, Np = _pick_fallback_tiles(B, C, N, itemsize, budget)
    x3p = x3 if Np == N else jnp.pad(x3, ((0, 0), (0, 0), (0, Np - N)))
    grid = (C // tc, B // tb, Np // tn)

    x_spec = pl.BlockSpec((tb, tc, tn), lambda c, b, n: (b, c, n))
    ch_spec = pl.BlockSpec((tc, 1), lambda c, b, n: (c, 0))

    stats_cost = pl.CostEstimate(flops=int(3 * B * C * N),
                                 transcendentals=int(C),
                                 bytes_accessed=int(B * C * Np * itemsize))
    scale, shift = pl.pallas_call(
        functools.partial(_bn_stats_kernel, inv_n=inv_n, eps=float(eps),
                          affine=bool(affine)),
        out_shape=(jax.ShapeDtypeStruct((C, 1), jnp.float32),
                   jax.ShapeDtypeStruct((C, 1), jnp.float32)),
        grid_spec=pltpu.PrefetchScalarGridSpec(
            num_scalar_prefetch=0,
            grid=grid,
            in_specs=[x_spec, ch_spec, ch_spec],
            out_specs=(ch_spec, ch_spec),
            scratch_shapes=[pltpu.VMEM((tc, tn), jnp.float32),
                            pltpu.VMEM((tc, tn), jnp.float32)],
        ),
        compiler_params=pltpu.CompilerParams(
            dimension_semantics=("parallel", "arbitrary", "arbitrary"),
            vmem_limit_bytes=vmem_limit),
        cost_estimate=stats_cost,
    )(x3p, gamma2d, beta2d)

    norm_cost = pl.CostEstimate(flops=int(2 * B * C * N),
                                transcendentals=0,
                                bytes_accessed=int(2 * B * C * Np * itemsize))
    out3 = pl.pallas_call(
        _bn_norm_kernel,
        out_shape=jax.ShapeDtypeStruct((B, C, Np), x.dtype),
        grid_spec=pltpu.PrefetchScalarGridSpec(
            num_scalar_prefetch=0,
            grid=grid,
            in_specs=[x_spec, ch_spec, ch_spec],
            out_specs=x_spec,
        ),
        compiler_params=pltpu.CompilerParams(
            dimension_semantics=("parallel", "parallel", "parallel"),
            vmem_limit_bytes=vmem_limit),
        cost_estimate=norm_cost,
    )(x3p, scale, shift)

    if Np != N:
        out3 = out3[:, :, :N]
    return out3.reshape(B, C, H, W)


# --------------------------------------------------------------------------- #
# Reference + test
# --------------------------------------------------------------------------- #

def _reference(x, gamma, beta, eps=1e-5, affine=True):
    mean = jnp.mean(x, axis=(0, 2, 3), keepdims=True)
    centered = x - mean
    var = jnp.mean(centered * centered, axis=(0, 2, 3), keepdims=True)
    x_norm = centered / jnp.sqrt(var + eps)
    if affine:
        x_norm = x_norm * gamma.reshape(1, -1, 1, 1) + beta.reshape(1, -1, 1, 1)
    return x_norm


if __name__ == "__main__":
    B, C, H, W = 2, 4, 16, 16
    key = jax.random.PRNGKey(0)
    kx, kg, kb = jax.random.split(key, 3)
    x = jax.random.normal(kx, (B, C, H, W), dtype=jnp.float32)
    # Non-trivial affine params to exercise the gamma/beta folding path.
    gamma = 1.0 + 0.1 * jax.random.normal(kg, (C,), dtype=jnp.float32)
    beta = 0.1 * jax.random.normal(kb, (C,), dtype=jnp.float32)

    ref = _reference(x, gamma, beta, eps=1e-5, affine=True)
    ref_na = _reference(x, gamma, beta, eps=1e-5, affine=False)

    # Primary (fused, channel-resident single-pass) path.
    out = jax.block_until_ready(
        custom_batchnorm2d(x, gamma, beta, eps=1e-5, affine=True))
    assert out.shape == (B, C, H, W)
    assert jnp.allclose(out, ref, atol=1e-5, rtol=1e-5), "fused affine mismatch"

    out_na = jax.block_until_ready(
        custom_batchnorm2d(x, eps=1e-5, affine=False))
    assert jnp.allclose(out_na, ref_na, atol=1e-5, rtol=1e-5), "fused non-affine mismatch"

    # Two-pass fallback path (exercised explicitly so it stays healthy).
    out_fb = jax.block_until_ready(
        custom_batchnorm2d(x, gamma, beta, eps=1e-5, affine=True,
                           _force_two_pass=True))
    assert jnp.allclose(out_fb, ref, atol=1e-5, rtol=1e-5), "fallback mismatch"

    print("KERNEL_OK")
</pallas_src>

<mosaic_0001>
module attributes {stable_mosaic.version = 11 : i64} {
  func.func @_bn_fused_kernel(%arg0: i32, %arg1: memref<2x4x256xf32, #tpu.memory_space<vmem>>, %arg2: memref<4x1xf32, #tpu.memory_space<vmem>>, %arg3: memref<4x1xf32, #tpu.memory_space<vmem>>, %arg4: memref<2x4x256xf32, #tpu.memory_space<vmem>>) attributes {dimension_semantics = [#tpu.dimension_semantics<parallel>], iteration_bounds = array<i64: 1>, scalar_prefetch = 0 : i64, scratch_operands = 0 : i64, tpu.core_type = #tpu.core_type<tc>, window_params = [{transform_indices = @transform_0, window_bounds = array<i64: 2, 4, 256>}, {transform_indices = @transform_1, window_bounds = array<i64: 4, 1>}, {transform_indices = @transform_2, window_bounds = array<i64: 4, 1>}, {transform_indices = @transform_3, window_bounds = array<i64: 2, 4, 256>}]} {
    %c0 = arith.constant 0 : index
    %c0_0 = arith.constant 0 : index
    %c0_1 = arith.constant 0 : index
    %0 = vector.load %arg1[%c0, %c0_0, %c0_1] : memref<2x4x256xf32, #tpu.memory_space<vmem>>, vector<2x4x256xf32>
    %cst = arith.constant dense<0.000000e+00> : vector<4x256xf32>
    %1 = vector.multi_reduction <add>, %0, %cst [0] : vector<2x4x256xf32> to vector<4x256xf32>
    %cst_2 = arith.constant dense<0.000000e+00> : vector<4xf32>
    %2 = vector.multi_reduction <add>, %1, %cst_2 [1] : vector<4x256xf32> to vector<4xf32>
    %3 = vector.shape_cast %2 : vector<4xf32> to vector<4x1xf32>
    %cst_3 = arith.constant 0.001953125 : f32
    %4 = vector.broadcast %cst_3 : f32 to vector<4x1xf32>
    %5 = arith.mulf %3, %4 : vector<4x1xf32>
    %6 = vector.shape_cast %5 : vector<4x1xf32> to vector<1x4x1xf32>
    %7 = vector.broadcast %6 : vector<1x4x1xf32> to vector<2x4x256xf32>
    %8 = arith.subf %0, %7 : vector<2x4x256xf32>
    %9 = arith.mulf %8, %8 : vector<2x4x256xf32>
    %cst_4 = arith.constant dense<0.000000e+00> : vector<4x256xf32>
    %10 = vector.multi_reduction <add>, %9, %cst_4 [0] : vector<2x4x256xf32> to vector<4x256xf32>
    %cst_5 = arith.constant dense<0.000000e+00> : vector<4xf32>
    %11 = vector.multi_reduction <add>, %10, %cst_5 [1] : vector<4x256xf32> to vector<4xf32>
    %12 = vector.shape_cast %11 : vector<4xf32> to vector<4x1xf32>
    %cst_6 = arith.constant 0.001953125 : f32
    %13 = vector.broadcast %cst_6 : f32 to vector<4x1xf32>
    %14 = arith.mulf %12, %13 : vector<4x1xf32>
    %cst_7 = arith.constant 9.99999974E-6 : f32
    %15 = vector.broadcast %cst_7 : f32 to vector<4x1xf32>
    %16 = arith.addf %14, %15 : vector<4x1xf32>
    %17 = math.rsqrt %16 : vector<4x1xf32>
    %c0_8 = arith.constant 0 : index
    %c0_9 = arith.constant 0 : index
    %18 = vector.load %arg2[%c0_8, %c0_9] : memref<4x1xf32, #tpu.memory_space<vmem>>, vector<4x1xf32>
    %19 = arith.mulf %18, %17 : vector<4x1xf32>
    %20 = vector.shape_cast %19 : vector<4x1xf32> to vector<1x4x1xf32>
    %21 = vector.broadcast %20 : vector<1x4x1xf32> to vector<2x4x256xf32>
    %22 = arith.mulf %8, %21 : vector<2x4x256xf32>
    %c0_10 = arith.constant 0 : index
    %c0_11 = arith.constant 0 : index
    %23 = vector.load %arg3[%c0_10, %c0_11] : memref<4x1xf32, #tpu.memory_space<vmem>>, vector<4x1xf32>
    %24 = vector.shape_cast %23 : vector<4x1xf32> to vector<1x4x1xf32>
    %25 = vector.broadcast %24 : vector<1x4x1xf32> to vector<2x4x256xf32>
    %26 = arith.addf %22, %25 : vector<2x4x256xf32>
    %c0_12 = arith.constant 0 : index
    %c0_13 = arith.constant 0 : index
    %c0_14 = arith.constant 0 : index
    %27 = vector.load %arg4[%c0_12, %c0_13, %c0_14] : memref<2x4x256xf32, #tpu.memory_space<vmem>>, vector<2x4x256xf32>
    tpu.vector_store %arg4[%c0_12, %c0_13, %c0_14], %26 {strides = array<i32>} : memref<2x4x256xf32, #tpu.memory_space<vmem>>, vector<2x4x256xf32>,
    return
  }
  func.func @transform_0(%arg0: i32) -> (i32, i32, i32) {
    %c0_i32 = arith.constant 0 : i32
    %c0_i32_0 = arith.constant 0 : i32
    %c0_i32_1 = arith.constant 0 : i32
    return %c0_i32, %arg0, %c0_i32_0 : i32, i32, i32
  }
  func.func @transform_1(%arg0: i32) -> (i32, i32) {
    %c0_i32 = arith.constant 0 : i32
    %c0_i32_0 = arith.constant 0 : i32
    return %arg0, %c0_i32 : i32, i32
  }
  func.func @transform_2(%arg0: i32) -> (i32, i32) {
    %c0_i32 = arith.constant 0 : i32
    %c0_i32_0 = arith.constant 0 : i32
    return %arg0, %c0_i32 : i32, i32
  }
  func.func @transform_3(%arg0: i32) -> (i32, i32, i32) {
    %c0_i32 = arith.constant 0 : i32
    %c0_i32_0 = arith.constant 0 : i32
    %c0_i32_1 = arith.constant 0 : i32
    return %c0_i32, %arg0, %c0_i32_0 : i32, i32, i32
  }
}

</mosaic_0001>

<llo_original>
// kernel: tpu_custom_call.1
$region0: #{tpu_custom_call.1}
  #allocation0 [shape = 'u32[]', space=smem, size = 0x4, offset = 0x4, fixed_abs, tag = 'smem constant byte address 0x4 - core index']
  #allocation1 [shape = 'u32[144,128]{1,0:T(1,128)}', space=vmem, size = 0x12000, scoped, tag = 'internal scratch']
  %s0 = inlined_call_operand.hbm [shape: f32[2,4,256], index: 0, kind: input, shape index: {}]
  %s1 = inlined_call_operand.vmem [shape: f32[4,1], index: 1, kind: input, shape index: {}]
  %s2 = inlined_call_operand.vmem [shape: f32[4,1], index: 2, kind: input, shape index: {}]
  %s3 = inlined_call_operand.hbm [shape: f32[2,4,256], index: 3, kind: output, shape index: {}]
  %s4 = sld [smem:[#allocation0]]
  $region26: #{tpu_custom_call.1} parent=0
    _
  %s6 = ssub.s32 1, %s4
  %s7 = scalar_select 0, %s6, %s4
  $region1: #{tpu_custom_call.1} parent=0
    #allocation2 [shape = 'u8[8192]{0}', space=vmem, size = 0x2000, scoped, tag = 'input window, operand 0, single buffered']
    #allocation3 [shape = 's32[1]{0}', space=sflag, size = 0x4, scoped, tag = 'scoped memory for tpu_custom_call.1']
    #allocation4 [shape = 's32[1]{0}', space=sflag, size = 0x4, scoped, tag = 'scoped memory for tpu_custom_call.1']
    #allocation5 [shape = 'u8[8192]{0}', space=vmem, size = 0x2000, scoped, tag = 'output window, operand 0, single buffered']
    %8 = vsyncpa [#allocation3], 0
    %9 = vsyncpa [#allocation4], 0
    // Predicated region
    $region2: #{tpu_custom_call.1} parent=1 // pred_check
      _
    $region3: #{tpu_custom_call.1} parent=1 // pred_check_branch
      %11 = sbr.rel (0) target = $region5
    $region4: #{tpu_custom_call.1} parent=1 // pred_region
      %s13 = ssub.s32 256, 256
      %14 = vsyncadd [#allocation3], %s13
      %s15 = sshll.u32 [#allocation2], 4
      %s16 = int_to_ptr.vmem [resolvable:$true] %s15
      %21 = dma.hbm_to_vmem [thread:$0]  %s0, 256, %s16, [#allocation3], 128, 128, 8
    $region5: #{tpu_custom_call.1} parent=1 // pred_fallthru
      _
    // Predicated region
    $region6: #{tpu_custom_call.1} parent=1 // pred_check
      _
    $region7: #{tpu_custom_call.1} parent=1 // pred_check_branch
      %23 = sbr.rel (0) target = $region9
    $region8: #{tpu_custom_call.1} parent=1 // pred_region
      _
    $region9: #{tpu_custom_call.1} parent=1 // pred_fallthru
      _
    // Predicated region
    $region10: #{tpu_custom_call.1} parent=1 // pred_check
      _
    $region11: #{tpu_custom_call.1} parent=1 // pred_check_branch
      %25 = sbr.rel (0) target = $region13
    $region12: #{tpu_custom_call.1} parent=1 // pred_region
      _
    $region13: #{tpu_custom_call.1} parent=1 // pred_fallthru
      _
    // Predicated region
    $region14: #{tpu_custom_call.1} parent=1 // pred_check
      _
    $region15: #{tpu_custom_call.1} parent=1 // pred_check_branch
      %27 = sbr.rel (0) target = $region17
    $region16: #{tpu_custom_call.1} parent=1 // pred_region
      %28 = dma.done [#allocation3], 256
    $region17: #{tpu_custom_call.1} parent=1 // pred_fallthru
      _
    %v29 = vld [vmem:[#allocation2] sm:$0xff]
    %v30 = vld [vmem:[#allocation2 + $0x8] sm:$0xff]
    %v33 = vcombine.high %v29, %v29
    %v34 = vcombine.high %v30, %v30
    %vm37 = vcmask 1043456
    %v38 = vsel %vm37, %v29, 0.0
    %v39 = vsel %vm37, %v30, 0.0
    %v40 = vadd.f32 %v38, %v39
    %v41 = vsel %vm37, %v33, 0.0
    %v42 = vsel %vm37, %v34, 0.0
    %v43 = vadd.f32 %v41, %v42
    %v44 = vsel %vm37, %v40, 0.0
    %v45 = vsel %vm37, %v43, 0.0
    %v46 = vadd.f32 %v44, %v45
    %47 = vadd.xlane.f32.xlu0 %v46
    %v48 = vpop.xlane.xlu0 %47
    %v49 = vmul.f32 %v48, 0.001953125
    %v52 = vunpack.c.l.s4 839922192
    %v53 = vunpack.c.0.s8 %v52
    %v54 = vlaneseq
    %v55 = vshrl.u32 %v54, 7
    %v56 = vsub.s32 %v53, %v55
    %v57 = vrot.slane %v49, %v56
    %v59 = vsub.f32 %v29, %v57
    %v60 = vsub.f32 %v30, %v57
    %v61 = vmul.f32 %v59, %v59
    %v62 = vmul.f32 %v60, %v60
    %v65 = vcombine.high %v61, %v61
    %v66 = vcombine.high %v62, %v62
    %v69 = vsel %vm37, %v61, 0.0
    %v70 = vsel %vm37, %v62, 0.0
    %v71 = vadd.f32 %v69, %v70
    %v72 = vsel %vm37, %v65, 0.0
    %v73 = vsel %vm37, %v66, 0.0
    %v74 = vadd.f32 %v72, %v73
    %v75 = vsel %vm37, %v71, 0.0
    %v76 = vsel %vm37, %v74, 0.0
    %v77 = vadd.f32 %v75, %v76
    %78 = vadd.xlane.f32.xlu0 %v77
    %v79 = vpop.xlane.xlu0 %78
    %v80 = vmul.f32 %v79, 0.001953125
    %v81 = vadd.f32 %v80, 1e-05
    %v82 = vrsqrt.pop %v81
    %v83 = vld [vmem:[%s1] sm:$0xf]
    %v84 = vmul.f32 %v83, %v82
    %86 = vset.pattern.permute.xlu0 0
    %87 = vperm.xlu0 %86, %v84
    %v88 = vpop.permute.xlu0 %87
    %v90 = vunpack.c.l.s4 839922192
    %v91 = vunpack.c.0.s8 %v90
    %v92 = vlaneseq
    %v93 = vshrl.u32 %v92, 7
    %v94 = vsub.s32 %v91, %v93
    %v95 = vrot.slane %v88, %v94
    %v97 = vmul.f32 %v59, %v95
    %v98 = vmul.f32 %v60, %v95
    %v99 = vld [vmem:[%s2] sm:$0xf]
    %101 = vset.pattern.permute.xlu0 0
    %102 = vperm.xlu0 %101, %v99
    %v103 = vpop.permute.xlu0 %102
    %v105 = vunpack.c.l.s4 839922192
    %v106 = vunpack.c.0.s8 %v105
    %v107 = vlaneseq
    %v108 = vshrl.u32 %v107, 7
    %v109 = vsub.s32 %v106, %v108
    %v110 = vrot.slane %v103, %v109
    %v112 = vadd.f32 %v97, %v110
    %v113 = vadd.f32 %v98, %v110
    %114 = vst [vmem:[#allocation5] sm:$0xff] %v112
    %115 = vst [vmem:[#allocation5 + $0x8] sm:$0xff] %v113
    // Predicated region
    $region18: #{tpu_custom_call.1} parent=1 // pred_check
      _
    $region19: #{tpu_custom_call.1} parent=1 // pred_check_branch
      %117 = sbr.rel (0) target = $region21
    $region20: #{tpu_custom_call.1} parent=1 // pred_region
      %s119 = ssub.s32 256, 256
      %120 = vsyncadd [#allocation4], %s119
      %s121 = sshll.u32 [#allocation5], 4
      %s122 = int_to_ptr.vmem [resolvable:$true] %s121
      %127 = dma.vmem_to_hbm [thread:$0]  %s122, 256, %s3, [#allocation4], 128, 128, 8
    $region21: #{tpu_custom_call.1} parent=1 // pred_fallthru
      _
    // Predicated region
    $region22: #{tpu_custom_call.1} parent=1 // pred_check
      _
    $region23: #{tpu_custom_call.1} parent=1 // pred_check_branch
      %129 = sbr.rel (0) target = $region25
    $region24: #{tpu_custom_call.1} parent=1 // pred_region
      %130 = dma.done [#allocation4], 256
    $region25: #{tpu_custom_call.1} parent=1 // pred_fallthru
      _
    %131 = vsyncpa [#allocation3], 1
    %132 = vsyncpa [#allocation4], 1

</llo_original>
